<compile_context>
chip_gen: v6e
topology: v6e:2x2x1
jax: 0.10.0
libtpu: 0.0.40
codegen_flags: <defaults>
</compile_context>

<pallas_src>
import functools

import jax
import jax.numpy as jnp
from jax.experimental import pallas as pl
from jax.experimental.pallas import tpu as pltpu


def _round_up(n, m):
    return ((n + m - 1) // m) * m


def _cdiv(a, b):
    return (a + b - 1) // b


_MAX_BLOCK_ROWS = 2048          # raised from 512 per perf feedback
_BIAS_ROWS = 8                  # bias rows appended to the weight slab


# ----------------------------------------------------------------------------
# Kernel: 4 lane-dense matmuls; weights + biases come from a single slab.
# ----------------------------------------------------------------------------
def _qduel_kernel(x_ref, w_ref, out_ref, *, s_pad):
    wdt = w_ref.dtype
    x = x_ref[...]                                    # (rows, s_pad)

    w1 = w_ref[0:s_pad, :]                            # (s_pad, 128) fused layer 1
    w2 = w_ref[s_pad:s_pad + 128, :]                  # (128, 128)  block-diag layer 2
    w3 = w_ref[s_pad + 128:s_pad + 256, :]            # (128, 128)  block-diag layer 3
    wh = w_ref[s_pad + 256:s_pad + 384, :]            # (128, 128)  fused dueling head
    b = w_ref[s_pad + 384:s_pad + 384 + _BIAS_ROWS, :]  # (8, 128); rows 0..3 live

    def layer(h, w, brow):
        y = jnp.dot(h, w, preferred_element_type=jnp.float32) + b[brow:brow + 1, :]
        return jnp.maximum(y, 0.0).astype(wdt)

    h = layer(x, w1, 0)
    h = layer(h, w2, 1)
    h = layer(h, w3, 2)
    # Head already contains the value broadcast + centered advantage, so this
    # single matmul IS the dueling combine.
    y = jnp.dot(h, wh, preferred_element_type=jnp.float32) + b[3:4, :]
    out_ref[...] = y.astype(out_ref.dtype)


# ----------------------------------------------------------------------------
# Parameter packing (done once, outside the kernel).
# ----------------------------------------------------------------------------
def pack_params(params, state_size, action_size, dtype=jnp.float32):
    """Fuse both branches into one 128-wide network and pack into ONE slab.

    Returns packed_w of shape (s_pad + 3*128 + 8, 128) in `dtype`, where the
    trailing 8 rows hold the 4 bias vectors.
    """
    a = action_size
    assert a <= 128, "head packing assumes action_size <= 128"
    assert params["w1_1"].shape == (state_size, 64), params["w1_1"].shape
    assert params["w1_2"].shape == (state_size, 64), params["w1_2"].shape
    for n in ("2_1", "2_2", "3_1", "3_2"):
        assert params[f"w{n}"].shape == (64, 64), params[f"w{n}"].shape
    assert params["w4_1"].shape == (64, 1) and params["w4_2"].shape == (64, a)

    # bf16 sublanes pack in pairs -> keep slab slice offsets 16-aligned.
    s_align = 8 if jnp.dtype(dtype).itemsize >= 4 else 16
    s_pad = _round_up(state_size, s_align)

    # Layer 1: (state_size, 128) = [w1_1 | w1_2], rows zero-padded to s_pad.
    w1 = jnp.concatenate([params["w1_1"], params["w1_2"]], axis=1)
    w1 = jnp.zeros((s_pad, 128), jnp.float32).at[:state_size, :].set(w1)
    b1 = jnp.concatenate([params["b1_1"], params["b1_2"]], axis=1)

    def block_diag(top, bot):
        z = jnp.zeros((64, 64), jnp.float32)
        return jnp.block([[top, z], [z, bot]])

    w2 = block_diag(params["w2_1"], params["w2_2"])
    b2 = jnp.concatenate([params["b2_1"], params["b2_2"]], axis=1)
    w3 = block_diag(params["w3_1"], params["w3_2"])
    b3 = jnp.concatenate([params["b3_1"], params["b3_2"]], axis=1)

    # Dueling head, mean folded into pre-centered advantage weights:
    #   out[b, a] = x1 @ w4_1 + b4_1 + x2 @ (w4_2 - mean) + (b4_2 - mean)
    w4_2c = params["w4_2"] - jnp.mean(params["w4_2"], axis=1, keepdims=True)
    b4_2c = params["b4_2"] - jnp.mean(params["b4_2"], axis=1, keepdims=True)
    wh = jnp.zeros((128, 128), jnp.float32)
    wh = wh.at[:64, :a].set(jnp.broadcast_to(params["w4_1"], (64, a)))
    wh = wh.at[64:, :a].set(w4_2c)
    bh = jnp.zeros((1, 128), jnp.float32).at[:, :a].set(params["b4_1"] + b4_2c)

    bias_block = jnp.concatenate(
        [b1, b2, b3, bh, jnp.zeros((_BIAS_ROWS - 4, 128), jnp.float32)], axis=0)

    packed_w = jnp.concatenate([w1, w2, w3, wh, bias_block], axis=0)
    return packed_w.astype(dtype)                      # (s_pad + 392, 128)


# ----------------------------------------------------------------------------
# Block / grid selection: balanced blocks, >=2 blocks for large batch (v7x).
# ----------------------------------------------------------------------------
def _choose_blocks(batch, row_align):
    num_blocks = max(_cdiv(batch, _MAX_BLOCK_ROWS), 1)
    if batch > 128:
        # v7x has 2 TensorCores: give the "parallel" grid at least 2 (even)
        # programs once there is enough work. Harmless on v5e/v6e.
        num_blocks = max(num_blocks, 2)
        if num_blocks % 2:
            num_blocks += 1
    block_rows = _round_up(_cdiv(batch, num_blocks), row_align)
    return block_rows, block_rows * num_blocks


# ----------------------------------------------------------------------------
# Wrapper
# ----------------------------------------------------------------------------
@functools.partial(jax.jit, static_argnames=("action_size",))
def qnetwork_duel_forward(state, packed_w, *, action_size):
    """state: (B, state_size). packed_w from pack_params(). Returns (B, A) f32."""
    batch, state_size = state.shape
    s_pad = packed_w.shape[0] - (3 * 128 + _BIAS_ROWS)
    assert s_pad >= state_size, (s_pad, state_size)
    dtype = packed_w.dtype
    itemsize = jnp.dtype(dtype).itemsize
    row_align = 8 if itemsize >= 4 else 16

    block_rows, b_pad = _choose_blocks(batch, row_align)

    x = state.astype(dtype)
    if (b_pad, s_pad) != (batch, state_size):
        # Balanced blocks keep this pad to < row_align rows per block; it is
        # skipped entirely when shapes already line up.
        x = jnp.pad(x, ((0, b_pad - batch), (0, s_pad - state_size)))

    grid = (b_pad // block_rows,)
    flops = 2 * b_pad * 128 * (s_pad + 3 * 128)
    bytes_accessed = itemsize * (b_pad * s_pad + packed_w.size + b_pad * 128)

    # Explicit scoped-VMEM budget: double-buffered x/out blocks + weight slab
    # (double-buffered by default) + generous headroom, clamped below v7x's
    # 64 MiB physical VMEM.
    vmem_need = (2 * block_rows * (s_pad + 128) + 2 * packed_w.shape[0] * 128) * itemsize
    vmem_limit = int(min(max(2 * vmem_need, 16 << 20), 56 << 20))

    out_padded = pl.pallas_call(
        functools.partial(_qduel_kernel, s_pad=s_pad),
        out_shape=jax.ShapeDtypeStruct((b_pad, 128), dtype),
        grid_spec=pltpu.PrefetchScalarGridSpec(
            num_scalar_prefetch=0,
            grid=grid,
            in_specs=[
                pl.BlockSpec((block_rows, s_pad), lambda i: (i, 0)),
                # Constant index_map -> weight slab stays VMEM-resident.
                pl.BlockSpec((s_pad + 3 * 128 + _BIAS_ROWS, 128), lambda i: (0, 0)),
            ],
            out_specs=pl.BlockSpec((block_rows, 128), lambda i: (i, 0)),
        ),
        compiler_params=pltpu.CompilerParams(
            dimension_semantics=("parallel",),
            vmem_limit_bytes=vmem_limit),
        cost_estimate=pl.CostEstimate(
            flops=flops, transcendentals=0, bytes_accessed=bytes_accessed),
    )(x, packed_w)

    # Lane-dense padded store in-kernel; slice back to the logical shape here.
    return out_padded[:batch, :action_size].astype(jnp.float32)


# ----------------------------------------------------------------------------
# Deterministic parameter init (PyTorch-Linear-style uniform(-1/sqrt(fan_in)))
# Weights stored as (in, out); biases as (1, out).
# ----------------------------------------------------------------------------
def init_params(key, state_size, action_size):
    dims = {
        "1_1": (state_size, 64), "2_1": (64, 64), "3_1": (64, 64), "4_1": (64, 1),
        "1_2": (state_size, 64), "2_2": (64, 64), "3_2": (64, 64),
        "4_2": (64, action_size),
    }
    params = {}
    keys = jax.random.split(key, 2 * len(dims))
    for i, (name, (fan_in, fan_out)) in enumerate(dims.items()):
        bound = 1.0 / jnp.sqrt(jnp.float32(fan_in))
        params[f"w{name}"] = jax.random.uniform(
            keys[2 * i], (fan_in, fan_out), jnp.float32, -bound, bound)
        params[f"b{name}"] = jax.random.uniform(
            keys[2 * i + 1], (1, fan_out), jnp.float32, -bound, bound)
    return params


# ----------------------------------------------------------------------------
# Pure-JAX reference (mirrors the PyTorch forward exactly)
# ----------------------------------------------------------------------------
def reference_forward(state, params):
    def lin(h, w, b):
        return h @ w + b

    x1 = jax.nn.relu(lin(state, params["w1_1"], params["b1_1"]))
    x1 = jax.nn.relu(lin(x1, params["w2_1"], params["b2_1"]))
    x1 = jax.nn.relu(lin(x1, params["w3_1"], params["b3_1"]))
    v = lin(x1, params["w4_1"], params["b4_1"])                     # (B, 1)

    x2 = jax.nn.relu(lin(state, params["w1_2"], params["b1_2"]))
    x2 = jax.nn.relu(lin(x2, params["w2_2"], params["b2_2"]))
    x2 = jax.nn.relu(lin(x2, params["w3_2"], params["b3_2"]))
    adv = lin(x2, params["w4_2"], params["b4_2"])                   # (B, A)

    return v + adv - jnp.mean(adv, axis=1, keepdims=True)


# ----------------------------------------------------------------------------
if __name__ == "__main__":
    state_size = 8
    action_size = 4
    batch = 2

    key = jax.random.PRNGKey(0)
    k_params, k_state = jax.random.split(key)

    params = init_params(k_params, state_size, action_size)
    state = jax.random.normal(k_state, (batch, state_size), jnp.float32)

    ref = reference_forward(state, params)

    # f32 path: matches reference to tight tolerance.
    packed_f32 = pack_params(params, state_size, action_size, dtype=jnp.float32)
    out = jax.block_until_ready(
        qnetwork_duel_forward(state, packed_f32, action_size=action_size))
    assert out.shape == (batch, action_size), out.shape
    assert jnp.allclose(out, ref, atol=1e-5, rtol=1e-5), (out, ref)

    # bf16 path: MXU-native rate + halved HBM traffic; looser tolerance.
    packed_bf16 = pack_params(params, state_size, action_size, dtype=jnp.bfloat16)
    out_bf16 = jax.block_until_ready(
        qnetwork_duel_forward(state, packed_bf16, action_size=action_size))
    assert out_bf16.shape == (batch, action_size), out_bf16.shape
    assert jnp.allclose(out_bf16, ref, atol=1e-1, rtol=1e-1), (out_bf16, ref)

    print("KERNEL_OK")
</pallas_src>

<mosaic_0001>
module attributes {stable_mosaic.version = 11 : i64} {
  func.func @_qduel_kernel(%arg0: i32, %arg1: memref<8x8xf32, #tpu.memory_space<vmem>>, %arg2: memref<400x128xf32, #tpu.memory_space<vmem>>, %arg3: memref<8x128xf32, #tpu.memory_space<vmem>>) attributes {dimension_semantics = [#tpu.dimension_semantics<parallel>], iteration_bounds = array<i64: 1>, scalar_prefetch = 0 : i64, scratch_operands = 0 : i64, tpu.core_type = #tpu.core_type<tc>, window_params = [{transform_indices = @transform_0, window_bounds = array<i64: 8, 8>}, {pipeline_mode = #tpu.pipeline_mode<synchronous>, transform_indices = @transform_1, window_bounds = array<i64: 400, 128>}, {transform_indices = @transform_2, window_bounds = array<i64: 8, 128>}]} {
    %c0 = arith.constant 0 : index
    %c0_0 = arith.constant 0 : index
    %0 = vector.load %arg1[%c0, %c0_0] : memref<8x8xf32, #tpu.memory_space<vmem>>, vector<8x8xf32>
    %c0_1 = arith.constant 0 : index
    %c0_2 = arith.constant 0 : index
    %1 = vector.load %arg2[%c0_1, %c0_2] : memref<400x128xf32, #tpu.memory_space<vmem>>, vector<8x128xf32>
    %c8 = arith.constant 8 : index
    %c0_3 = arith.constant 0 : index
    %2 = vector.load %arg2[%c8, %c0_3] : memref<400x128xf32, #tpu.memory_space<vmem>>, vector<128x128xf32>
    %c136 = arith.constant 136 : index
    %c0_4 = arith.constant 0 : index
    %3 = vector.load %arg2[%c136, %c0_4] : memref<400x128xf32, #tpu.memory_space<vmem>>, vector<128x128xf32>
    %c264 = arith.constant 264 : index
    %c0_5 = arith.constant 0 : index
    %4 = vector.load %arg2[%c264, %c0_5] : memref<400x128xf32, #tpu.memory_space<vmem>>, vector<128x128xf32>
    %c392 = arith.constant 392 : index
    %c0_6 = arith.constant 0 : index
    %5 = vector.load %arg2[%c392, %c0_6] : memref<400x128xf32, #tpu.memory_space<vmem>>, vector<8x128xf32>
    %cst = arith.constant dense<0.000000e+00> : vector<8x128xf32>
    %6 = tpu.matmul %0, %1, %cst {dimension_numbers = #tpu.dot_dimension_numbers<[1], [0], [0], [1], [0, 0, 1, 1], [], []>} : vector<8x8xf32>, vector<8x128xf32>, vector<8x128xf32> -> vector<8x128xf32>
    %7 = vector.extract_strided_slice %5 {offsets = [0, 0], sizes = [1, 128], strides = [1, 1]} : vector<8x128xf32> to vector<1x128xf32>
    %8 = vector.broadcast %7 : vector<1x128xf32> to vector<8x128xf32>
    %9 = arith.addf %6, %8 : vector<8x128xf32>
    %cst_7 = arith.constant 0.000000e+00 : f32
    %10 = vector.broadcast %cst_7 : f32 to vector<8x128xf32>
    %11 = arith.maximumf %9, %10 : vector<8x128xf32>
    %cst_8 = arith.constant dense<0.000000e+00> : vector<8x128xf32>
    %12 = tpu.matmul %11, %2, %cst_8 {dimension_numbers = #tpu.dot_dimension_numbers<[1], [0], [0], [1], [0, 0, 1, 1], [], []>} : vector<8x128xf32>, vector<128x128xf32>, vector<8x128xf32> -> vector<8x128xf32>
    %13 = vector.extract_strided_slice %5 {offsets = [1, 0], sizes = [1, 128], strides = [1, 1]} : vector<8x128xf32> to vector<1x128xf32>
    %14 = vector.broadcast %13 : vector<1x128xf32> to vector<8x128xf32>
    %15 = arith.addf %12, %14 : vector<8x128xf32>
    %cst_9 = arith.constant 0.000000e+00 : f32
    %16 = vector.broadcast %cst_9 : f32 to vector<8x128xf32>
    %17 = arith.maximumf %15, %16 : vector<8x128xf32>
    %cst_10 = arith.constant dense<0.000000e+00> : vector<8x128xf32>
    %18 = tpu.matmul %17, %3, %cst_10 {dimension_numbers = #tpu.dot_dimension_numbers<[1], [0], [0], [1], [0, 0, 1, 1], [], []>} : vector<8x128xf32>, vector<128x128xf32>, vector<8x128xf32> -> vector<8x128xf32>
    %19 = vector.extract_strided_slice %5 {offsets = [2, 0], sizes = [1, 128], strides = [1, 1]} : vector<8x128xf32> to vector<1x128xf32>
    %20 = vector.broadcast %19 : vector<1x128xf32> to vector<8x128xf32>
    %21 = arith.addf %18, %20 : vector<8x128xf32>
    %cst_11 = arith.constant 0.000000e+00 : f32
    %22 = vector.broadcast %cst_11 : f32 to vector<8x128xf32>
    %23 = arith.maximumf %21, %22 : vector<8x128xf32>
    %cst_12 = arith.constant dense<0.000000e+00> : vector<8x128xf32>
    %24 = tpu.matmul %23, %4, %cst_12 {dimension_numbers = #tpu.dot_dimension_numbers<[1], [0], [0], [1], [0, 0, 1, 1], [], []>} : vector<8x128xf32>, vector<128x128xf32>, vector<8x128xf32> -> vector<8x128xf32>
    %25 = vector.extract_strided_slice %5 {offsets = [3, 0], sizes = [1, 128], strides = [1, 1]} : vector<8x128xf32> to vector<1x128xf32>
    %26 = vector.broadcast %25 : vector<1x128xf32> to vector<8x128xf32>
    %27 = arith.addf %24, %26 : vector<8x128xf32>
    %c0_13 = arith.constant 0 : index
    %c0_14 = arith.constant 0 : index
    %28 = vector.load %arg3[%c0_13, %c0_14] : memref<8x128xf32, #tpu.memory_space<vmem>>, vector<8x128xf32>
    tpu.vector_store %arg3[%c0_13, %c0_14], %27 {strides = array<i32>} : memref<8x128xf32, #tpu.memory_space<vmem>>, vector<8x128xf32>,
    return
  }
  func.func @transform_0(%arg0: i32) -> (i32, i32) {
    %c0_i32 = arith.constant 0 : i32
    %c0_i32_0 = arith.constant 0 : i32
    return %arg0, %c0_i32 : i32, i32
  }
  func.func @transform_1(%arg0: i32) -> (i32, i32) {
    %c0_i32 = arith.constant 0 : i32
    %c0_i32_0 = arith.constant 0 : i32
    %c0_i32_1 = arith.constant 0 : i32
    return %c0_i32, %c0_i32_0 : i32, i32
  }
  func.func @transform_2(%arg0: i32) -> (i32, i32) {
    %c0_i32 = arith.constant 0 : i32
    %c0_i32_0 = arith.constant 0 : i32
    return %arg0, %c0_i32 : i32, i32
  }
}

</mosaic_0001>

<llo_original>
// kernel: qnetwork_duel_forward.1
$region0: #{qnetwork_duel_forward.1}
  #allocation0 [shape = 'u32[]', space=smem, size = 0x4, offset = 0x4, fixed_abs, tag = 'smem constant byte address 0x4 - core index']
  #allocation1 [shape = 'u32[144,128]{1,0:T(1,128)}', space=vmem, size = 0x12000, scoped, tag = 'internal scratch']
  %s0 = inlined_call_operand.vmem [shape: f32[8,8], index: 0, kind: input, shape index: {}]
  %s1 = inlined_call_operand.hbm [shape: f32[400,128], index: 1, kind: input, shape index: {}]
  %s2 = inlined_call_operand.vmem [shape: f32[8,128], index: 2, kind: output, shape index: {}]
  %s3 = sld [smem:[#allocation0]]
  $region22: #{qnetwork_duel_forward.1} parent=0
    _
  %s5 = ssub.s32 1, %s3
  %s6 = scalar_select 0, %s5, %s3
  $region1: #{qnetwork_duel_forward.1} parent=0
    #allocation2 [shape = 'u8[204800]{0}', space=vmem, size = 0x32000, scoped, tag = 'input window, operand 1, single buffered']
    #allocation3 [shape = 's32[1]{0}', space=sflag, size = 0x4, scoped, tag = 'scoped memory for qnetwork_duel_forward.1']
    %7 = vsyncpa [#allocation3], 0
    // Predicated region
    $region2: #{qnetwork_duel_forward.1} parent=1 // pred_check
      _
    $region3: #{qnetwork_duel_forward.1} parent=1 // pred_check_branch
      %9 = sbr.rel (0) target = $region5
    $region4: #{qnetwork_duel_forward.1} parent=1 // pred_region
      _
    $region5: #{qnetwork_duel_forward.1} parent=1 // pred_fallthru
      _
    // Predicated region
    $region6: #{qnetwork_duel_forward.1} parent=1 // pred_check
      _
    $region7: #{qnetwork_duel_forward.1} parent=1 // pred_check_branch
      %11 = sbr.rel (0) target = $region9
    $region8: #{qnetwork_duel_forward.1} parent=1 // pred_region
      %s13 = ssub.s32 6400, 6400
      %14 = vsyncadd [#allocation3], %s13
      %s15 = sshll.u32 [#allocation2], 4
      %s16 = int_to_ptr.vmem [resolvable:$true] %s15
      %21 = dma.hbm_to_vmem [thread:$0]  %s1, 6400, %s16, [#allocation3], 128, 128, 8
    $region9: #{qnetwork_duel_forward.1} parent=1 // pred_fallthru
      _
    // Predicated region
    $region10: #{qnetwork_duel_forward.1} parent=1 // pred_check
      _
    $region11: #{qnetwork_duel_forward.1} parent=1 // pred_check_branch
      %23 = sbr.rel (0) target = $region13
    $region12: #{qnetwork_duel_forward.1} parent=1 // pred_region
      %24 = dma.done [#allocation3], 6400
    $region13: #{qnetwork_duel_forward.1} parent=1 // pred_fallthru
      _
    %v25 = vld [vmem:[%s0] sm:$0xff]
    %v26 = vld [vmem:[#allocation2] sm:$0xff]
    %v27 = vld [vmem:[#allocation2 + $0x8] sm:$0xff]
    %v28 = vld [vmem:[#allocation2 + $0x10] sm:$0xff]
    %v29 = vld [vmem:[#allocation2 + $0x18] sm:$0xff]
    %v30 = vld [vmem:[#allocation2 + $0x20] sm:$0xff]
    %v31 = vld [vmem:[#allocation2 + $0x28] sm:$0xff]
    %v32 = vld [vmem:[#allocation2 + $0x30] sm:$0xff]
    %v33 = vld [vmem:[#allocation2 + $0x38] sm:$0xff]
    %v34 = vld [vmem:[#allocation2 + $0x40] sm:$0xff]
    %v35 = vld [vmem:[#allocation2 + $0x48] sm:$0xff]
    %v36 = vld [vmem:[#allocation2 + $0x50] sm:$0xff]
    %v37 = vld [vmem:[#allocation2 + $0x58] sm:$0xff]
    %v38 = vld [vmem:[#allocation2 + $0x60] sm:$0xff]
    %v39 = vld [vmem:[#allocation2 + $0x68] sm:$0xff]
    %v40 = vld [vmem:[#allocation2 + $0x70] sm:$0xff]
    %v41 = vld [vmem:[#allocation2 + $0x78] sm:$0xff]
    %v42 = vld [vmem:[#allocation2 + $0x80] sm:$0xff]
    %v43 = vld [vmem:[#allocation2 + $0x88] sm:$0xff]
    %v44 = vld [vmem:[#allocation2 + $0x90] sm:$0xff]
    %v45 = vld [vmem:[#allocation2 + $0x98] sm:$0xff]
    %v46 = vld [vmem:[#allocation2 + $0xa0] sm:$0xff]
    %v47 = vld [vmem:[#allocation2 + $0xa8] sm:$0xff]
    %v48 = vld [vmem:[#allocation2 + $0xb0] sm:$0xff]
    %v49 = vld [vmem:[#allocation2 + $0xb8] sm:$0xff]
    %v50 = vld [vmem:[#allocation2 + $0xc0] sm:$0xff]
    %v51 = vld [vmem:[#allocation2 + $0xc8] sm:$0xff]
    %v52 = vld [vmem:[#allocation2 + $0xd0] sm:$0xff]
    %v53 = vld [vmem:[#allocation2 + $0xd8] sm:$0xff]
    %v54 = vld [vmem:[#allocation2 + $0xe0] sm:$0xff]
    %v55 = vld [vmem:[#allocation2 + $0xe8] sm:$0xff]
    %v56 = vld [vmem:[#allocation2 + $0xf0] sm:$0xff]
    %v57 = vld [vmem:[#allocation2 + $0xf8] sm:$0xff]
    %v58 = vld [vmem:[#allocation2 + $0x100] sm:$0xff]
    %v59 = vld [vmem:[#allocation2 + $0x108] sm:$0xff]
    %v60 = vld [vmem:[#allocation2 + $0x110] sm:$0xff]
    %v61 = vld [vmem:[#allocation2 + $0x118] sm:$0xff]
    %v62 = vld [vmem:[#allocation2 + $0x120] sm:$0xff]
    %v63 = vld [vmem:[#allocation2 + $0x128] sm:$0xff]
    %v64 = vld [vmem:[#allocation2 + $0x130] sm:$0xff]
    %v65 = vld [vmem:[#allocation2 + $0x138] sm:$0xff]
    %v66 = vld [vmem:[#allocation2 + $0x140] sm:$0xff]
    %v67 = vld [vmem:[#allocation2 + $0x148] sm:$0xff]
    %v68 = vld [vmem:[#allocation2 + $0x150] sm:$0xff]
    %v69 = vld [vmem:[#allocation2 + $0x158] sm:$0xff]
    %v70 = vld [vmem:[#allocation2 + $0x160] sm:$0xff]
    %v71 = vld [vmem:[#allocation2 + $0x168] sm:$0xff]
    %v72 = vld [vmem:[#allocation2 + $0x170] sm:$0xff]
    %v73 = vld [vmem:[#allocation2 + $0x178] sm:$0xff]
    %v74 = vld [vmem:[#allocation2 + $0x180] sm:$0xff]
    %v75 = vld [vmem:[#allocation2 + $0x188] sm:$0xff]
    %v76 = vlaneseq
    %v77 = vshrl.u32 %v76, 7
    %v78 = vsub.s32 0, %v77
    %v79 = vrot.slane %v75, %v78
    %vm80 = vcmask 64512
    %v82 = vsel %vm80, %v25, 0
    %84 = vmatprep.subr.mxu0 0.0
    %85 = vmatpush1.msra.mxu0 0.0
    %86 = vmatprep.subr.mxu0 0.0
    %87 = vmatpush1.msra.mxu0 0.0
    %88 = vmatprep.subr.mxu0 0.0
    %89 = vmatpush1.msra.mxu0 0.0
    %90 = vmatprep.subr.mxu0 0.0
    %91 = vmatpush1.msra.mxu0 0.0
    %92 = vmatprep.subr.mxu0 0.0
    %93 = vmatpush1.msra.mxu0 0.0
    %94 = vmatprep.subr.mxu0 0.0
    %95 = vmatpush1.msra.mxu0 0.0
    %96 = vmatprep.subr.mxu0 0.0
    %97 = vmatpush1.msra.mxu0 0.0
    %98 = vmatprep.subr.mxu0 0.0
    %99 = vmatpush1.msra.mxu0 0.0
    %100 = vmatprep.subr.mxu0 0.0
    %101 = vmatpush1.msra.mxu0 0.0
    %102 = vmatprep.subr.mxu0 0.0
    %103 = vmatpush1.msra.mxu0 0.0
    %104 = vmatprep.subr.mxu0 0.0
    %105 = vmatpush1.msra.mxu0 0.0
    %106 = vmatprep.subr.mxu0 0.0
    %107 = vmatpush1.msra.mxu0 0.0
    %108 = vmatprep.subr.mxu0 0.0
    %109 = vmatpush1.msra.mxu0 0.0
    %110 = vmatprep.subr.mxu0 0.0
    %111 = vmatpush1.msra.mxu0 0.0
    %112 = vmatprep.subr.mxu0 0.0
    %113 = vmatpush1.msra.mxu0 0.0
    %114 = vmatprep.subr.mxu0 0.0
    %115 = vmatpush1.msra.mxu0 %v26
    %116 = vmatprep.subr.mxu0 0.0
    %117 = vmatpush2.msra.mxu0 0.0
    %118 = vmatprep.subr.mxu0 0.0
    %119 = vmatpush2.msra.mxu0 0.0
    %120 = vmatprep.subr.mxu0 0.0
    %121 = vmatpush2.msra.mxu0 0.0
    %122 = vmatprep.subr.mxu0 0.0
    %123 = vmatpush2.msra.mxu0 0.0
    %124 = vmatprep.subr.mxu0 0.0
    %125 = vmatpush2.msra.mxu0 0.0
    %126 = vmatprep.subr.mxu0 0.0
    %127 = vmatpush2.msra.mxu0 0.0
    %128 = vmatprep.subr.mxu0 0.0
    %129 = vmatpush2.msra.mxu0 0.0
    %130 = vmatprep.subr.mxu0 0.0
    %131 = vmatpush2.msra.mxu0 0.0
    %132 = vmatprep.subr.mxu0 0.0
    %133 = vmatpush2.msra.mxu0 0.0
    %134 = vmatprep.subr.mxu0 0.0
    %135 = vmatpush2.msra.mxu0 0.0
    %136 = vmatprep.subr.mxu0 0.0
    %137 = vmatpush2.msra.mxu0 0.0
    %138 = vmatprep.subr.mxu0 0.0
    %139 = vmatpush2.msra.mxu0 0.0
    %140 = vmatprep.subr.mxu0 0.0
    %141 = vmatpush2.msra.mxu0 0.0
    %142 = vmatprep.subr.mxu0 0.0
    %143 = vmatpush2.msra.mxu0 0.0
    %144 = vmatprep.subr.mxu0 0.0
    %145 = vmatpush2.msra.mxu0 0.0
    %146 = vmatprep.subr.mxu0 0.0
    %147 = vmatpush2.msra.mxu0 0.0
    %148 = vmatprep.mubr.f32.mxu0 0.0
    %149 = vmatmul.mubr.f32.gmra.mxu0 %v82
    %v150 = vpop.f32.mrf.mxu0
    %v151 = vadd.f32 %v79, %v150
    %v152 = vpop.f32.mrf.mxu0
    %153 = vdwg.mxu0
    %v154 = vmax.f32 %v151, 0.0
    %v155 = vlaneseq
    %v156 = vshrl.u32 %v155, 7
    %v157 = vsub.s32 1, %v156
    %v158 = vrot.slane %v75, %v157
    %159 = vmatprep.subr.mxu0 0.0
    %160 = vmatpush1.msra.mxu0 %v42
    %161 = vmatprep.subr.mxu0 0.0
    %162 = vmatpush1.msra.mxu0 %v41
    %163 = vmatprep.subr.mxu0 0.0
    %164 = vmatpush1.msra.mxu0 %v40
    %165 = vmatprep.subr.mxu0 0.0
    %166 = vmatpush1.msra.mxu0 %v39
    %167 = vmatprep.subr.mxu0 0.0
    %168 = vmatpush1.msra.mxu0 %v38
    %169 = vmatprep.subr.mxu0 0.0
    %170 = vmatpush1.msra.mxu0 %v37
    %171 = vmatprep.subr.mxu0 0.0
    %172 = vmatpush1.msra.mxu0 %v36
    %173 = vmatprep.subr.mxu0 0.0
    %174 = vmatpush1.msra.mxu0 %v35
    %175 = vmatprep.subr.mxu0 0.0
    %176 = vmatpush1.msra.mxu0 %v34
    %177 = vmatprep.subr.mxu0 0.0
    %178 = vmatpush1.msra.mxu0 %v33
    %179 = vmatprep.subr.mxu0 0.0
    %180 = vmatpush1.msra.mxu0 %v32
    %181 = vmatprep.subr.mxu0 0.0
    %182 = vmatpush1.msra.mxu0 %v31
    %183 = vmatprep.subr.mxu0 0.0
    %184 = vmatpush1.msra.mxu0 %v30
    %185 = vmatprep.subr.mxu0 0.0
    %186 = vmatpush1.msra.mxu0 %v29
    %187 = vmatprep.subr.mxu0 0.0
    %188 = vmatpush1.msra.mxu0 %v28
    %189 = vmatprep.subr.mxu0 0.0
    %190 = vmatpush1.msra.mxu0 %v27
    %191 = vmatprep.subr.mxu0 0.0
    %192 = vmatpush2.msra.mxu0 0.0
    %193 = vmatprep.subr.mxu0 0.0
    %194 = vmatpush2.msra.mxu0 0.0
    %195 = vmatprep.subr.mxu0 0.0
    %196 = vmatpush2.msra.mxu0 0.0
    %197 = vmatprep.subr.mxu0 0.0
    %198 = vmatpush2.msra.mxu0 0.0
    %199 = vmatprep.subr.mxu0 0.0
    %200 = vmatpush2.msra.mxu0 0.0
    %201 = vmatprep.subr.mxu0 0.0
    %202 = vmatpush2.msra.mxu0 0.0
    %203 = vmatprep.subr.mxu0 0.0
    %204 = vmatpush2.msra.mxu0 0.0
    %205 = vmatprep.subr.mxu0 0.0
    %206 = vmatpush2.msra.mxu0 0.0
    %207 = vmatprep.subr.mxu0 0.0
    %208 = vmatpush2.msra.mxu0 0.0
    %209 = vmatprep.subr.mxu0 0.0
    %210 = vmatpush2.msra.mxu0 0.0
    %211 = vmatprep.subr.mxu0 0.0
    %212 = vmatpush2.msra.mxu0 0.0
    %213 = vmatprep.subr.mxu0 0.0
    %214 = vmatpush2.msra.mxu0 0.0
    %215 = vmatprep.subr.mxu0 0.0
    %216 = vmatpush2.msra.mxu0 0.0
    %217 = vmatprep.subr.mxu0 0.0
    %218 = vmatpush2.msra.mxu0 0.0
    %219 = vmatprep.subr.mxu0 0.0
    %220 = vmatpush2.msra.mxu0 0.0
    %221 = vmatprep.subr.mxu0 0.0
    %222 = vmatpush2.msra.mxu0 0.0
    %223 = vmatprep.mubr.f32.mxu0 0.0
    %224 = vmatmul.mubr.f32.gmra.mxu0 %v154
    %v225 = vpop.f32.mrf.mxu0
    %v226 = vadd.f32 %v158, %v225
    %v227 = vpop.f32.mrf.mxu0
    %228 = vdwg.mxu0
    %v229 = vmax.f32 %v226, 0.0
    %v230 = vlaneseq
    %v231 = vshrl.u32 %v230, 7
    %v232 = vsub.s32 2, %v231
    %v233 = vrot.slane %v75, %v232
    %234 = vmatprep.subr.mxu0 0.0
    %235 = vmatpush1.msra.mxu0 %v58
    %236 = vmatprep.subr.mxu0 0.0
    %237 = vmatpush1.msra.mxu0 %v57
    %238 = vmatprep.subr.mxu0 0.0
    %239 = vmatpush1.msra.mxu0 %v56
    %240 = vmatprep.subr.mxu0 0.0
    %241 = vmatpush1.msra.mxu0 %v55
    %242 = vmatprep.subr.mxu0 0.0
    %243 = vmatpush1.msra.mxu0 %v54
    %244 = vmatprep.subr.mxu0 0.0
    %245 = vmatpush1.msra.mxu0 %v53
    %246 = vmatprep.subr.mxu0 0.0
    %247 = vmatpush1.msra.mxu0 %v52
    %248 = vmatprep.subr.mxu0 0.0
    %249 = vmatpush1.msra.mxu0 %v51
    %250 = vmatprep.subr.mxu0 0.0
    %251 = vmatpush1.msra.mxu0 %v50
    %252 = vmatprep.subr.mxu0 0.0
    %253 = vmatpush1.msra.mxu0 %v49
    %254 = vmatprep.subr.mxu0 0.0
    %255 = vmatpush1.msra.mxu0 %v48
    %256 = vmatprep.subr.mxu0 0.0
    %257 = vmatpush1.msra.mxu0 %v47
    %258 = vmatprep.subr.mxu0 0.0
    %259 = vmatpush1.msra.mxu0 %v46
    %260 = vmatprep.subr.mxu0 0.0
    %261 = vmatpush1.msra.mxu0 %v45
    %262 = vmatprep.subr.mxu0 0.0
    %263 = vmatpush1.msra.mxu0 %v44
    %264 = vmatprep.subr.mxu0 0.0
    %265 = vmatpush1.msra.mxu0 %v43
    %266 = vmatprep.subr.mxu0 0.0
    %267 = vmatpush2.msra.mxu0 0.0
    %268 = vmatprep.subr.mxu0 0.0
    %269 = vmatpush2.msra.mxu0 0.0
    %270 = vmatprep.subr.mxu0 0.0
    %271 = vmatpush2.msra.mxu0 0.0
    %272 = vmatprep.subr.mxu0 0.0
    %273 = vmatpush2.msra.mxu0 0.0
    %274 = vmatprep.subr.mxu0 0.0
    %275 = vmatpush2.msra.mxu0 0.0
    %276 = vmatprep.subr.mxu0 0.0
    %277 = vmatpush2.msra.mxu0 0.0
    %278 = vmatprep.subr.mxu0 0.0
    %279 = vmatpush2.msra.mxu0 0.0
    %280 = vmatprep.subr.mxu0 0.0
    %281 = vmatpush2.msra.mxu0 0.0
    %282 = vmatprep.subr.mxu0 0.0
    %283 = vmatpush2.msra.mxu0 0.0
    %284 = vmatprep.subr.mxu0 0.0
    %285 = vmatpush2.msra.mxu0 0.0
    %286 = vmatprep.subr.mxu0 0.0
    %287 = vmatpush2.msra.mxu0 0.0
    %288 = vmatprep.subr.mxu0 0.0
    %289 = vmatpush2.msra.mxu0 0.0
    %290 = vmatprep.subr.mxu0 0.0
    %291 = vmatpush2.msra.mxu0 0.0
    %292 = vmatprep.subr.mxu0 0.0
    %293 = vmatpush2.msra.mxu0 0.0
    %294 = vmatprep.subr.mxu0 0.0
    %295 = vmatpush2.msra.mxu0 0.0
    %296 = vmatprep.subr.mxu0 0.0
    %297 = vmatpush2.msra.mxu0 0.0
    %298 = vmatprep.mubr.f32.mxu0 0.0
    %299 = vmatmul.mubr.f32.gmra.mxu0 %v229
    %v300 = vpop.f32.mrf.mxu0
    %v301 = vadd.f32 %v233, %v300
    %v302 = vpop.f32.mrf.mxu0
    %303 = vdwg.mxu0
    %v304 = vmax.f32 %v301, 0.0
    %v305 = vlaneseq
    %v306 = vshrl.u32 %v305, 7
    %v307 = vsub.s32 3, %v306
    %v308 = vrot.slane %v75, %v307
    %309 = vmatprep.subr.mxu0 0.0
    %310 = vmatpush1.msra.mxu0 %v74
    %311 = vmatprep.subr.mxu0 0.0
    %312 = vmatpush1.msra.mxu0 %v73
    %313 = vmatprep.subr.mxu0 0.0
    %314 = vmatpush1.msra.mxu0 %v72
    %315 = vmatprep.subr.mxu0 0.0
    %316 = vmatpush1.msra.mxu0 %v71
    %317 = vmatprep.subr.mxu0 0.0
    %318 = vmatpush1.msra.mxu0 %v70
    %319 = vmatprep.subr.mxu0 0.0
    %320 = vmatpush1.msra.mxu0 %v69
    %321 = vmatprep.subr.mxu0 0.0
    %322 = vmatpush1.msra.mxu0 %v68
    %323 = vmatprep.subr.mxu0 0.0
    %324 = vmatpush1.msra.mxu0 %v67
    %325 = vmatprep.subr.mxu0 0.0
    %326 = vmatpush1.msra.mxu0 %v66
    %327 = vmatprep.subr.mxu0 0.0
    %328 = vmatpush1.msra.mxu0 %v65
    %329 = vmatprep.subr.mxu0 0.0
    %330 = vmatpush1.msra.mxu0 %v64
    %331 = vmatprep.subr.mxu0 0.0
    %332 = vmatpush1.msra.mxu0 %v63
    %333 = vmatprep.subr.mxu0 0.0
    %334 = vmatpush1.msra.mxu0 %v62
    %335 = vmatprep.subr.mxu0 0.0
    %336 = vmatpush1.msra.mxu0 %v61
    %337 = vmatprep.subr.mxu0 0.0
    %338 = vmatpush1.msra.mxu0 %v60
    %339 = vmatprep.subr.mxu0 0.0
    %340 = vmatpush1.msra.mxu0 %v59
    %341 = vmatprep.subr.mxu0 0.0
    %342 = vmatpush2.msra.mxu0 0.0
    %343 = vmatprep.subr.mxu0 0.0
    %344 = vmatpush2.msra.mxu0 0.0
    %345 = vmatprep.subr.mxu0 0.0
    %346 = vmatpush2.msra.mxu0 0.0
    %347 = vmatprep.subr.mxu0 0.0
    %348 = vmatpush2.msra.mxu0 0.0
    %349 = vmatprep.subr.mxu0 0.0
    %350 = vmatpush2.msra.mxu0 0.0
    %351 = vmatprep.subr.mxu0 0.0
    %352 = vmatpush2.msra.mxu0 0.0
    %353 = vmatprep.subr.mxu0 0.0
    %354 = vmatpush2.msra.mxu0 0.0
    %355 = vmatprep.subr.mxu0 0.0
    %356 = vmatpush2.msra.mxu0 0.0
    %357 = vmatprep.subr.mxu0 0.0
    %358 = vmatpush2.msra.mxu0 0.0
    %359 = vmatprep.subr.mxu0 0.0
    %360 = vmatpush2.msra.mxu0 0.0
    %361 = vmatprep.subr.mxu0 0.0
    %362 = vmatpush2.msra.mxu0 0.0
    %363 = vmatprep.subr.mxu0 0.0
    %364 = vmatpush2.msra.mxu0 0.0
    %365 = vmatprep.subr.mxu0 0.0
    %366 = vmatpush2.msra.mxu0 0.0
    %367 = vmatprep.subr.mxu0 0.0
    %368 = vmatpush2.msra.mxu0 0.0
    %369 = vmatprep.subr.mxu0 0.0
    %370 = vmatpush2.msra.mxu0 0.0
    %371 = vmatprep.subr.mxu0 0.0
    %372 = vmatpush2.msra.mxu0 0.0
    %373 = vmatprep.mubr.f32.mxu0 0.0
    %374 = vmatmul.mubr.f32.gmra.mxu0 %v304
    %v375 = vpop.f32.mrf.mxu0
    %v376 = vadd.f32 %v308, %v375
    %v377 = vpop.f32.mrf.mxu0
    %378 = vdwg.mxu0
    %379 = vst [vmem:[%s2] sm:$0xff] %v376
    // Predicated region
    $region14: #{qnetwork_duel_forward.1} parent=1 // pred_check
      _
    $region15: #{qnetwork_duel_forward.1} parent=1 // pred_check_branch
      %381 = sbr.rel (0) target = $region17
    $region16: #{qnetwork_duel_forward.1} parent=1 // pred_region
      _
    $region17: #{qnetwork_duel_forward.1} parent=1 // pred_fallthru
      _
    // Predicated region
    $region18: #{qnetwork_duel_forward.1} parent=1 // pred_check
      _
    $region19: #{qnetwork_duel_forward.1} parent=1 // pred_check_branch
      %383 = sbr.rel (0) target = $region21
    $region20: #{qnetwork_duel_forward.1} parent=1 // pred_region
      _
    $region21: #{qnetwork_duel_forward.1} parent=1 // pred_fallthru
      _
    %384 = vsyncpa [#allocation3], 1

</llo_original>
